<compile_context>
chip_gen: v7x
topology: tpu7x:2x2x1
jax: 0.10.0
libtpu: 0.0.40
codegen_flags: <defaults>
</compile_context>

<pallas_src>
import functools

import jax
import jax.numpy as jnp
from jax import lax
from jax.experimental import pallas as pl
from jax.experimental.pallas import tpu as pltpu


# ---------------------------------------------------------------------------
# Kernels
# ---------------------------------------------------------------------------
def _excite(pooled, w1, w2):
    """pooled: (bt, C) f32 -> gate (bt, C) f32. Linear/ReLU/Linear/Sigmoid."""
    y1 = lax.dot_general(pooled, w1, (((1,), (1,)), ((), ())),
                         preferred_element_type=jnp.float32)          # (bt, Ch)
    y1 = jnp.maximum(y1, 0.0)
    y2 = lax.dot_general(y1, w2, (((1,), (1,)), ((), ())),
                         preferred_element_type=jnp.float32)          # (bt, C)
    return jax.nn.sigmoid(y2)


def _se_single_pass_kernel(x_ref, w1_ref, w2_ref, o_ref, *, inv_hw):
    """x_ref/o_ref: (bt, C, HW); w1: (Ch, C); w2: (C, Ch)."""
    # Squeeze: f32 accumulation without materializing an f32 copy of the tile.
    pooled = jnp.sum(x_ref[...], axis=-1, dtype=jnp.float32) * inv_hw  # (bt, C)
    gate = _excite(pooled, w1_ref[...], w2_ref[...])[:, :, None]       # (bt, C, 1)
    # Scale: re-read the tile from VMEM (free) instead of keeping it live
    # across the excitation (lower vreg/VMEM pressure).
    o_ref[...] = (x_ref[...] * gate).astype(o_ref.dtype)


def _se_pool_excite_kernel(x_ref, w1_ref, w2_ref, gate_ref, acc_ref, *,
                           inv_hw, hw, st):
    """Fallback pass A: tiled spatial reduction + excitation -> (bt, C, 1)."""
    s = pl.program_id(1)

    @pl.when(s == 0)
    def _():
        acc_ref[...] = jnp.zeros_like(acc_ref)

    x = x_ref[...]                                                     # (bt, C, st)
    # Mask lanes beyond the true spatial extent (last partial spatial tile).
    lane = lax.broadcasted_iota(jnp.int32, x.shape, 2) + s * st
    xm = jnp.where(lane < hw, x.astype(jnp.float32), 0.0)
    acc_ref[...] += jnp.sum(xm, axis=-1)

    @pl.when(s == pl.num_programs(1) - 1)
    def _():
        pooled = acc_ref[...] * inv_hw                                 # (bt, C)
        gate_ref[...] = _excite(pooled, w1_ref[...], w2_ref[...])[:, :, None]


def _se_scale_kernel(x_ref, gate_ref, o_ref):
    """Fallback pass B: x * gate with the per-channel gate broadcast on lanes."""
    o_ref[...] = (x_ref[...] * gate_ref[...]).astype(o_ref.dtype)


# ---------------------------------------------------------------------------
# Wrapper
# ---------------------------------------------------------------------------
def _weight_specs(hidden, C, index_map, buffer_once):
    shapes = [(hidden, C), (C, hidden)]
    specs = []
    for shp in shapes:
        if buffer_once:
            try:
                specs.append(pl.BlockSpec(shp, index_map,
                                          pipeline_mode=pl.Buffered(1)))
                continue
            except TypeError:
                pass  # jax version without pipeline_mode on BlockSpec
        specs.append(pl.BlockSpec(shp, index_map))
    return specs


def se_block(x, w1, w2, *, force_two_pass=False, spatial_tile=None):
    """x: (B, C, H, W); w1: (C//r, C); w2: (C, C//r). Returns (B, C, H, W)."""
    B, C, H, W = x.shape
    hidden = w1.shape[0]
    HW = H * W
    xr = x.reshape(B, C, HW)                     # free (contiguous) reshape

    itemsize = jnp.dtype(x.dtype).itemsize
    bytes_per_batch = C * HW * itemsize
    weight_bytes = 4 * hidden * C * jnp.dtype(w1.dtype).itemsize  # worst-case 2x2 bufs
    headroom = 2 << 20

    # Generation-aware VMEM ceiling (v7x: 64 MiB per TC; v5e/v6e: 128 MiB).
    try:
        vmem_cap = int(pltpu.get_tpu_info().vmem_capacity_bytes)
    except Exception:
        vmem_cap = 128 << 20
    safe_cap = int(0.72 * vmem_cap)

    target_buf_bytes = 4 << 20          # ~4 MiB / stream buffer: roofline knee
    inv_hw = 1.0 / HW

    single_pass_need = 4 * bytes_per_batch + weight_bytes + headroom  # bt = 1
    if not force_two_pass and single_pass_need <= safe_cap:
        # ----------------- Single pass over x -----------------
        bt = max(1, min(B, target_buf_bytes // bytes_per_batch))
        bt = min(bt, max(1, (safe_cap - weight_bytes - headroom)
                         // (4 * bytes_per_batch)))
        if B >= 2:
            bt = min(bt, pl.cdiv(B, 2))          # >=2 grid steps (v7x megacore)
        grid_b = pl.cdiv(B, bt)

        vmem_need = 4 * bt * bytes_per_batch + weight_bytes + headroom
        vmem_limit = int(min(max(vmem_need, 16 << 20), safe_cap))

        kernel = functools.partial(_se_single_pass_kernel, inv_hw=inv_hw)
        x_spec = pl.BlockSpec((bt, C, HW), lambda b: (b, 0, 0))
        o_spec = pl.BlockSpec((bt, C, HW), lambda b: (b, 0, 0))

        def run(buffer_weights_once):
            w_specs = _weight_specs(hidden, C, lambda b: (0, 0),
                                    buffer_weights_once)
            return pl.pallas_call(
                kernel,
                out_shape=jax.ShapeDtypeStruct((B, C, HW), x.dtype),
                grid=(grid_b,),
                in_specs=[x_spec] + w_specs,
                out_specs=o_spec,
                compiler_params=pltpu.CompilerParams(
                    dimension_semantics=("parallel",),
                    vmem_limit_bytes=vmem_limit),
            )(xr, w1, w2)

        try:
            out = run(True)       # single-buffer the resident weights
        except Exception:
            out = run(False)      # safe fallback if Buffered(1) is rejected
        return out.reshape(B, C, H, W)

    # ----------------- Two-pass fallback (VMEM overflow) -----------------
    # Pass A pools over spatial tiles and writes a (B, C, 1) gate; pass B is a
    # tiled scale-only pass.  Costs one extra read of x (~1.5x traffic) but
    # runs feature maps whose single (1, C, HW) tile would not fit VMEM.
    st = spatial_tile
    if st is None:
        st = max(128, ((target_buf_bytes // (C * itemsize)) // 128) * 128)
    if st >= HW:
        st = HW                                   # full-extent block is legal
    grid_s = pl.cdiv(HW, st)

    tile_bytes = C * st * itemsize
    bt = max(1, min(B, target_buf_bytes // tile_bytes))
    if B >= 2:
        bt = min(bt, pl.cdiv(B, 2))
    grid_b = pl.cdiv(B, bt)
    gate_bytes = bt * C * 4

    vmem_a = 2 * bt * tile_bytes + 3 * gate_bytes + weight_bytes + headroom
    vmem_b = 4 * bt * tile_bytes + 2 * gate_bytes + headroom

    pool_kernel = functools.partial(_se_pool_excite_kernel,
                                    inv_hw=inv_hw, hw=HW, st=st)
    gate = pl.pallas_call(
        pool_kernel,
        out_shape=jax.ShapeDtypeStruct((B, C, 1), jnp.float32),
        grid=(grid_b, grid_s),
        in_specs=[
            pl.BlockSpec((bt, C, st), lambda b, s: (b, 0, s)),
            pl.BlockSpec((hidden, C), lambda b, s: (0, 0)),
            pl.BlockSpec((C, hidden), lambda b, s: (0, 0)),
        ],
        out_specs=pl.BlockSpec((bt, C, 1), lambda b, s: (b, 0, 0)),
        scratch_shapes=[pltpu.VMEM((bt, C), jnp.float32)],
        compiler_params=pltpu.CompilerParams(
            dimension_semantics=("parallel", "arbitrary"),
            vmem_limit_bytes=int(min(max(vmem_a, 16 << 20), safe_cap))),
    )(xr, w1, w2)

    out = pl.pallas_call(
        _se_scale_kernel,
        out_shape=jax.ShapeDtypeStruct((B, C, HW), x.dtype),
        grid=(grid_b, grid_s),
        in_specs=[
            pl.BlockSpec((bt, C, st), lambda b, s: (b, 0, s)),
            pl.BlockSpec((bt, C, 1), lambda b, s: (b, 0, 0)),
        ],
        out_specs=pl.BlockSpec((bt, C, st), lambda b, s: (b, 0, s)),
        compiler_params=pltpu.CompilerParams(
            dimension_semantics=("parallel", "parallel"),
            vmem_limit_bytes=int(min(max(vmem_b, 16 << 20), safe_cap))),
    )(xr, gate)
    return out.reshape(B, C, H, W)


# ---------------------------------------------------------------------------
# Reference + test
# ---------------------------------------------------------------------------
def se_block_ref(x, w1, w2):
    """Pure-JAX reference mirroring the PyTorch forward (f32)."""
    xf = x.astype(jnp.float32)
    y = jnp.mean(xf, axis=(2, 3))                # AdaptiveAvgPool2d(1) -> (B, C)
    y = jnp.maximum(y @ w1.T, 0.0)               # Linear(C, C//r, bias=False)+ReLU
    y = jax.nn.sigmoid(y @ w2.T)                 # Linear(C//r, C, bias=False)+Sigmoid
    return xf * y[:, :, None, None]


if __name__ == "__main__":
    key = jax.random.PRNGKey(0)

    # Shared weights: channels=32, reduction=16 -> hidden=2 (torch layout, no bias).
    C, reduction = 32, 16
    hidden = C // reduction
    k1, k2, key = jax.random.split(key, 3)
    w1 = jax.random.normal(k1, (hidden, C), dtype=jnp.float32) / jnp.sqrt(C)
    w2 = jax.random.normal(k2, (C, hidden), dtype=jnp.float32) / jnp.sqrt(hidden)

    # Case 1: f32, 16x16 spatial, B=2 -> single-pass path, 2 grid steps.
    kx, key = jax.random.split(key)
    x = jax.random.normal(kx, (2, C, 16, 16), dtype=jnp.float32)
    out = jax.block_until_ready(se_block(x, w1, w2))
    assert out.shape == x.shape
    assert jnp.allclose(out, se_block_ref(x, w1, w2), atol=1e-5, rtol=1e-5)

    # Case 2: bf16 streaming, odd batch (B=3) and non-128-multiple spatial
    # (14x14) -> unpadded lane tail + cdiv grid with a partial batch block.
    kx2, key = jax.random.split(key)
    x2 = jax.random.normal(kx2, (3, C, 14, 14), dtype=jnp.float32)
    x2b = x2.astype(jnp.bfloat16)
    out2 = jax.block_until_ready(se_block(x2b, w1, w2))
    ref2 = se_block_ref(x2b.astype(jnp.float32), w1, w2)
    assert out2.dtype == jnp.bfloat16
    assert jnp.allclose(out2.astype(jnp.float32), ref2, atol=3e-2, rtol=3e-2)

    # Case 3: exercise the two-pass VMEM-overflow fallback (forced), with a
    # partial spatial tile (196 = 128 + 68) and a partial batch block.
    out3 = jax.block_until_ready(
        se_block(x2, w1, w2, force_two_pass=True, spatial_tile=128))
    assert jnp.allclose(out3, se_block_ref(x2, w1, w2), atol=1e-5, rtol=1e-5)

    print("KERNEL_OK")
</pallas_src>

<mosaic_0001>
module attributes {stable_mosaic.version = 11 : i64} {
  func.func @_se_single_pass_kernel(%arg0: i32, %arg1: memref<1x32x256xf32, #tpu.memory_space<vmem>>, %arg2: memref<2x32xf32, #tpu.memory_space<vmem>>, %arg3: memref<32x2xf32, #tpu.memory_space<vmem>>, %arg4: memref<1x32x256xf32, #tpu.memory_space<vmem>>) attributes {dimension_semantics = [#tpu.dimension_semantics<parallel>], iteration_bounds = array<i64: 2>, scalar_prefetch = 0 : i64, scratch_operands = 0 : i64, tpu.core_type = #tpu.core_type<tc>, window_params = [{transform_indices = @transform_0, window_bounds = array<i64: 1, 32, 256>}, {pipeline_mode = #tpu.pipeline_mode<synchronous>, transform_indices = @transform_1, window_bounds = array<i64: 2, 32>}, {pipeline_mode = #tpu.pipeline_mode<synchronous>, transform_indices = @transform_2, window_bounds = array<i64: 32, 2>}, {transform_indices = @transform_3, window_bounds = array<i64: 1, 32, 256>}]} {
    %c0 = arith.constant 0 : index
    %c0_0 = arith.constant 0 : index
    %c0_1 = arith.constant 0 : index
    %0 = vector.load %arg1[%c0, %c0_0, %c0_1] : memref<1x32x256xf32, #tpu.memory_space<vmem>>, vector<1x32x256xf32>
    %cst = arith.constant dense<0.000000e+00> : vector<1x32xf32>
    %1 = vector.multi_reduction <add>, %0, %cst [2] : vector<1x32x256xf32> to vector<1x32xf32>
    %cst_2 = arith.constant 3.906250e-03 : f32
    %2 = vector.broadcast %cst_2 : f32 to vector<1x32xf32>
    %3 = arith.mulf %1, %2 : vector<1x32xf32>
    %c0_3 = arith.constant 0 : index
    %c0_4 = arith.constant 0 : index
    %4 = vector.load %arg2[%c0_3, %c0_4] : memref<2x32xf32, #tpu.memory_space<vmem>>, vector<2x32xf32>
    %c0_5 = arith.constant 0 : index
    %c0_6 = arith.constant 0 : index
    %5 = vector.load %arg3[%c0_5, %c0_6] : memref<32x2xf32, #tpu.memory_space<vmem>>, vector<32x2xf32>
    %cst_7 = arith.constant dense<0.000000e+00> : vector<1x2xf32>
    %6 = tpu.matmul %3, %4, %cst_7 {dimension_numbers = #tpu.dot_dimension_numbers<[1], [1], [0], [0], [0, 0, 1, 0], [], []>} : vector<1x32xf32>, vector<2x32xf32>, vector<1x2xf32> -> vector<1x2xf32>
    %cst_8 = arith.constant 0.000000e+00 : f32
    %7 = vector.broadcast %cst_8 : f32 to vector<1x2xf32>
    %8 = arith.maximumf %6, %7 : vector<1x2xf32>
    %cst_9 = arith.constant dense<0.000000e+00> : vector<1x32xf32>
    %9 = tpu.matmul %8, %5, %cst_9 {dimension_numbers = #tpu.dot_dimension_numbers<[1], [1], [0], [0], [0, 0, 1, 0], [], []>} : vector<1x2xf32>, vector<32x2xf32>, vector<1x32xf32> -> vector<1x32xf32>
    %10 = arith.negf %9 : vector<1x32xf32>
    %11 = math.exp %10 : vector<1x32xf32>
    %cst_10 = arith.constant 1.000000e+00 : f32
    %12 = vector.broadcast %cst_10 : f32 to vector<1x32xf32>
    %13 = arith.addf %12, %11 : vector<1x32xf32>
    %14 = arith.divf %12, %13 : vector<1x32xf32>
    %15 = vector.shape_cast %14 : vector<1x32xf32> to vector<1x32x1xf32>
    %c0_11 = arith.constant 0 : index
    %c0_12 = arith.constant 0 : index
    %c0_13 = arith.constant 0 : index
    %16 = vector.load %arg1[%c0_11, %c0_12, %c0_13] : memref<1x32x256xf32, #tpu.memory_space<vmem>>, vector<1x32x256xf32>
    %17 = vector.broadcast %15 : vector<1x32x1xf32> to vector<1x32x256xf32>
    %18 = arith.mulf %16, %17 : vector<1x32x256xf32>
    %c0_14 = arith.constant 0 : index
    %c0_15 = arith.constant 0 : index
    %c0_16 = arith.constant 0 : index
    %19 = vector.load %arg4[%c0_14, %c0_15, %c0_16] : memref<1x32x256xf32, #tpu.memory_space<vmem>>, vector<1x32x256xf32>
    tpu.vector_store %arg4[%c0_14, %c0_15, %c0_16], %18 {strides = array<i32>} : memref<1x32x256xf32, #tpu.memory_space<vmem>>, vector<1x32x256xf32>,
    return
  }
  func.func @transform_0(%arg0: i32) -> (i32, i32, i32) {
    %c0_i32 = arith.constant 0 : i32
    %c0_i32_0 = arith.constant 0 : i32
    %c0_i32_1 = arith.constant 0 : i32
    return %arg0, %c0_i32, %c0_i32_0 : i32, i32, i32
  }
  func.func @transform_1(%arg0: i32) -> (i32, i32) {
    %c0_i32 = arith.constant 0 : i32
    %c0_i32_0 = arith.constant 0 : i32
    %c0_i32_1 = arith.constant 0 : i32
    return %c0_i32, %c0_i32_0 : i32, i32
  }
  func.func @transform_2(%arg0: i32) -> (i32, i32) {
    %c0_i32 = arith.constant 0 : i32
    %c0_i32_0 = arith.constant 0 : i32
    %c0_i32_1 = arith.constant 0 : i32
    return %c0_i32, %c0_i32_0 : i32, i32
  }
  func.func @transform_3(%arg0: i32) -> (i32, i32, i32) {
    %c0_i32 = arith.constant 0 : i32
    %c0_i32_0 = arith.constant 0 : i32
    %c0_i32_1 = arith.constant 0 : i32
    return %arg0, %c0_i32, %c0_i32_0 : i32, i32, i32
  }
}

module attributes {stable_mosaic.version = 11 : i64} {
  func.func @_se_single_pass_kernel(%arg0: i32, %arg1: memref<1x32x256xf32, #tpu.memory_space<vmem>>, %arg2: memref<2x32xf32, #tpu.memory_space<vmem>>, %arg3: memref<32x2xf32, #tpu.memory_space<vmem>>, %arg4: memref<1x32x256xf32, #tpu.memory_space<vmem>>) attributes {dimension_semantics = [#tpu.dimension_semantics<parallel>], iteration_bounds = array<i64: 2>, scalar_prefetch = 0 : i64, scratch_operands = 0 : i64, tpu.core_type = #tpu.core_type<tc>, window_params = [{transform_indices = @transform_0, window_bounds = array<i64: 1, 32, 256>}, {pipeline_mode = #tpu.pipeline_mode<synchronous>, transform_indices = @transform_1, window_bounds = array<i64: 2, 32>}, {pipeline_mode = #tpu.pipeline_mode<synchronous>, transform_indices = @transform_2, window_bounds = array<i64: 32, 2>}, {transform_indices = @transform_3, window_bounds = array<i64: 1, 32, 256>}]} {
    %c0 = arith.constant 0 : index
    %c0_0 = arith.constant 0 : index
    %c0_1 = arith.constant 0 : index
    %0 = vector.load %arg1[%c0, %c0_0, %c0_1] : memref<1x32x256xf32, #tpu.memory_space<vmem>>, vector<1x32x256xf32>
    %cst = arith.constant dense<0.000000e+00> : vector<1x32xf32>
    %1 = vector.multi_reduction <add>, %0, %cst [2] : vector<1x32x256xf32> to vector<1x32xf32>
    %cst_2 = arith.constant 3.906250e-03 : f32
    %2 = vector.broadcast %cst_2 : f32 to vector<1x32xf32>
    %3 = arith.mulf %1, %2 : vector<1x32xf32>
    %c0_3 = arith.constant 0 : index
    %c0_4 = arith.constant 0 : index
    %4 = vector.load %arg2[%c0_3, %c0_4] : memref<2x32xf32, #tpu.memory_space<vmem>>, vector<2x32xf32>
    %c0_5 = arith.constant 0 : index
    %c0_6 = arith.constant 0 : index
    %5 = vector.load %arg3[%c0_5, %c0_6] : memref<32x2xf32, #tpu.memory_space<vmem>>, vector<32x2xf32>
    %cst_7 = arith.constant dense<0.000000e+00> : vector<1x2xf32>
    %6 = tpu.matmul %3, %4, %cst_7 {dimension_numbers = #tpu.dot_dimension_numbers<[1], [1], [0], [0], [0, 0, 1, 0], [], []>} : vector<1x32xf32>, vector<2x32xf32>, vector<1x2xf32> -> vector<1x2xf32>
    %cst_8 = arith.constant 0.000000e+00 : f32
    %7 = vector.broadcast %cst_8 : f32 to vector<1x2xf32>
    %8 = arith.maximumf %6, %7 : vector<1x2xf32>
    %cst_9 = arith.constant dense<0.000000e+00> : vector<1x32xf32>
    %9 = tpu.matmul %8, %5, %cst_9 {dimension_numbers = #tpu.dot_dimension_numbers<[1], [1], [0], [0], [0, 0, 1, 0], [], []>} : vector<1x2xf32>, vector<32x2xf32>, vector<1x32xf32> -> vector<1x32xf32>
    %10 = arith.negf %9 : vector<1x32xf32>
    %11 = math.exp %10 : vector<1x32xf32>
    %cst_10 = arith.constant 1.000000e+00 : f32
    %12 = vector.broadcast %cst_10 : f32 to vector<1x32xf32>
    %13 = arith.addf %12, %11 : vector<1x32xf32>
    %14 = arith.divf %12, %13 : vector<1x32xf32>
    %15 = vector.shape_cast %14 : vector<1x32xf32> to vector<1x32x1xf32>
    %c0_11 = arith.constant 0 : index
    %c0_12 = arith.constant 0 : index
    %c0_13 = arith.constant 0 : index
    %16 = vector.load %arg1[%c0_11, %c0_12, %c0_13] : memref<1x32x256xf32, #tpu.memory_space<vmem>>, vector<1x32x256xf32>
    %17 = vector.broadcast %15 : vector<1x32x1xf32> to vector<1x32x256xf32>
    %18 = arith.mulf %16, %17 : vector<1x32x256xf32>
    %c0_14 = arith.constant 0 : index
    %c0_15 = arith.constant 0 : index
    %c0_16 = arith.constant 0 : index
    %19 = vector.load %arg4[%c0_14, %c0_15, %c0_16] : memref<1x32x256xf32, #tpu.memory_space<vmem>>, vector<1x32x256xf32>
    tpu.vector_store %arg4[%c0_14, %c0_15, %c0_16], %18 {strides = array<i32>} : memref<1x32x256xf32, #tpu.memory_space<vmem>>, vector<1x32x256xf32>,
    return
  }
  func.func @transform_0(%arg0: i32) -> (i32, i32, i32) {
    %c0_i32 = arith.constant 0 : i32
    %c0_i32_0 = arith.constant 0 : i32
    %c0_i32_1 = arith.constant 0 : i32
    return %arg0, %c0_i32, %c0_i32_0 : i32, i32, i32
  }
  func.func @transform_1(%arg0: i32) -> (i32, i32) {
    %c0_i32 = arith.constant 0 : i32
    %c0_i32_0 = arith.constant 0 : i32
    %c0_i32_1 = arith.constant 0 : i32
    return %c0_i32, %c0_i32_0 : i32, i32
  }
  func.func @transform_2(%arg0: i32) -> (i32, i32) {
    %c0_i32 = arith.constant 0 : i32
    %c0_i32_0 = arith.constant 0 : i32
    %c0_i32_1 = arith.constant 0 : i32
    return %c0_i32, %c0_i32_0 : i32, i32
  }
  func.func @transform_3(%arg0: i32) -> (i32, i32, i32) {
    %c0_i32 = arith.constant 0 : i32
    %c0_i32_0 = arith.constant 0 : i32
    %c0_i32_1 = arith.constant 0 : i32
    return %arg0, %c0_i32, %c0_i32_0 : i32, i32, i32
  }
}

</mosaic_0001>

<llo_original>
// kernel: tpu_custom_call.1
$region0: #{tpu_custom_call.1}
  #allocation0 [shape = 'u32[]', space=smem, size = 0x4, offset = 0x4, fixed_abs, tag = 'smem constant byte address 0x4 - core index']
  #allocation1 [shape = 'u32[144,128]{1,0:T(1,128)}', space=vmem, size = 0x12000, scoped, tag = 'internal scratch']
  %s0 = inlined_call_operand.hbm [shape: f32[2,32,256], index: 0, kind: input, shape index: {}]
  %s1 = inlined_call_operand.vmem [shape: f32[2,32], index: 1, kind: input, shape index: {}]
  %s2 = inlined_call_operand.vmem [shape: f32[32,2], index: 2, kind: input, shape index: {}]
  %s3 = inlined_call_operand.hbm [shape: f32[2,32,256], index: 3, kind: output, shape index: {}]
  %s4 = sld [smem:[#allocation0]]
  $region49: #{tpu_custom_call.1} parent=0
    _
  %s6 = ssub.s32 1, %s4
  %s7 = scalar_select 0, %s6, %s4
  $region1: #{tpu_custom_call.1} parent=0
    #allocation2 [shape = 'u8[65536]{0}', space=vmem, size = 0x10000, scoped, tag = 'input window, operand 0']
    #allocation3 [shape = 's32[2]{0}', space=sflag, size = 0x8, scoped, tag = 'scoped memory for tpu_custom_call.1']
    #allocation4 [shape = 's32[2]{0}', space=sflag, size = 0x8, scoped, tag = 'scoped memory for tpu_custom_call.1']
    #allocation5 [shape = 'u8[65536]{0}', space=vmem, size = 0x10000, scoped, tag = 'output window, operand 0']
    %8 = vsyncpa [#allocation3], 0
    %s9 = scalar_lea.sflag [#allocation3], 1
    %10 = vsyncpa %s9, 0
    %11 = vsyncpa [#allocation4], 0
    %s12 = scalar_lea.sflag [#allocation4], 1
    %13 = vsyncpa %s12, 0
    loop: start=0, step=1, limit=4
    $region2: #{tpu_custom_call.1} parent=1 // loop_pre_header
      _
    $region3: #{tpu_custom_call.1} parent=1 // loop_header
      %s15 = sphi 0, %s19
      %p16 = scmp.ge.s32.totalorder %s15, 4
      %s25 = sphi 0, %s27
      %s28 = sphi 0, %s25
      %s29 = sphi 0, %s28
      %s45 = sphi 0, %s29
      %s49 = sphi 0, %s49
      %s51 = sphi 0, %s49
      %s52 = sphi 0, %s51
      %s66 = sphi 0, %s52
      %s70 = sphi 0, %s70
      %s72 = sphi 0, %s70
      %s73 = sphi 0, %s72
      %s87 = sphi 0, %s73
      %s93 = sphi 0, %s95
      %s96 = sphi 0, %s93
      %s97 = sphi 0, %s96
      %s113 = sphi 0, %s97
    $region4: #{tpu_custom_call.1} parent=1 // loop_header_branch
      %18 = sbr.rel (%p16) target = $region8
    $region5: #{tpu_custom_call.1} parent=1 // loop_body
      %s20 = ssub.s32 %s15, 1
      %s21 = ssub.s32 %s15, 2
      %s22 = sadd.s32 %s15, 1
      %s23 = ssub.s32 %s15, %s22
      %p24 = scmp.eq.s32.totalorder %s23, 0
      %s26 = sadd.s32 %s25, 1
      %s27 = scalar_select %p24, %s25, %s26
      %p30 = pneg %p24
      %p31 = scmp.eq.s32.totalorder %s15, 1
      %p32 = por %p30, %p31
      %p33 = scmp.ne.s32.totalorder %s25, %s28
      %p34 = scmp.eq.s32.totalorder %s15, 0
      %p35 = por %p33, %p34
      %p36 = scmp.ne.s32.totalorder %s25, %s28
      %p37 = scmp.eq.s32.totalorder %s20, 1
      %p38 = por %p36, %p37
      %p39 = scmp.ne.s32.totalorder %s28, %s29
      %p40 = scmp.eq.s32.totalorder %s20, 0
      %p41 = por %p39, %p40
      %p42 = scmp.ne.s32.totalorder %s28, %s29
      %p43 = scmp.eq.s32.totalorder %s21, 1
      %p44 = por %p42, %p43
      %p46 = scmp.ne.s32.totalorder %s29, %s45
      %p47 = scmp.eq.s32.totalorder %s21, 0
      %p48 = por %p46, %p47
      %s50 = sadd.s32 %s49, 1
      %p53 = scmp.eq.s32.totalorder %s15, 1
      %p54 = scmp.ne.s32.totalorder %s49, %s51
      %p55 = scmp.eq.s32.totalorder %s15, 0
      %p56 = por %p54, %p55
      %p57 = scmp.ne.s32.totalorder %s49, %s51
      %p58 = scmp.eq.s32.totalorder %s20, 1
      %p59 = por %p57, %p58
      %p60 = scmp.ne.s32.totalorder %s51, %s52
      %p61 = scmp.eq.s32.totalorder %s20, 0
      %p62 = por %p60, %p61
      %p63 = scmp.ne.s32.totalorder %s51, %s52
      %p64 = scmp.eq.s32.totalorder %s21, 1
      %p65 = por %p63, %p64
      %p67 = scmp.ne.s32.totalorder %s52, %s66
      %p68 = scmp.eq.s32.totalorder %s21, 0
      %p69 = por %p67, %p68
      %s71 = sadd.s32 %s70, 1
      %p74 = scmp.eq.s32.totalorder %s15, 1
      %p75 = scmp.ne.s32.totalorder %s70, %s72
      %p76 = scmp.eq.s32.totalorder %s15, 0
      %p77 = por %p75, %p76
      %p78 = scmp.ne.s32.totalorder %s70, %s72
      %p79 = scmp.eq.s32.totalorder %s20, 1
      %p80 = por %p78, %p79
      %p81 = scmp.ne.s32.totalorder %s72, %s73
      %p82 = scmp.eq.s32.totalorder %s20, 0
      %p83 = por %p81, %p82
      %p84 = scmp.ne.s32.totalorder %s72, %s73
      %p85 = scmp.eq.s32.totalorder %s21, 1
      %p86 = por %p84, %p85
      %p88 = scmp.ne.s32.totalorder %s73, %s87
      %p89 = scmp.eq.s32.totalorder %s21, 0
      %p90 = por %p88, %p89
      %s91 = ssub.s32 %s15, %s22
      %p92 = scmp.eq.s32.totalorder %s91, 0
      %s94 = sadd.s32 %s93, 1
      %s95 = scalar_select %p92, %s93, %s94
      %p98 = pneg %p92
      %p99 = scmp.eq.s32.totalorder %s15, 1
      %p100 = por %p98, %p99
      %p101 = scmp.ne.s32.totalorder %s93, %s96
      %p102 = scmp.eq.s32.totalorder %s15, 0
      %p103 = por %p101, %p102
      %p104 = scmp.ne.s32.totalorder %s93, %s96
      %p105 = scmp.eq.s32.totalorder %s20, 1
      %p106 = por %p104, %p105
      %p107 = scmp.ne.s32.totalorder %s96, %s97
      %p108 = scmp.eq.s32.totalorder %s20, 0
      %p109 = por %p107, %p108
      %p110 = scmp.ne.s32.totalorder %s96, %s97
      %p111 = scmp.eq.s32.totalorder %s21, 1
      %p112 = por %p110, %p111
      %p114 = scmp.ne.s32.totalorder %s97, %s113
      %p115 = scmp.eq.s32.totalorder %s21, 0
      %p116 = por %p114, %p115
      %p117 = scmp.le.s32.totalorder 1, %s15
      %p118 = scmp.lt.s32.totalorder %s15, 3
      %p119 = pnand %p117, %p118
      %p120 = pneg %p119
      // Predicated region
      $region9: #{tpu_custom_call.1} parent=5 // pred_check
        _
      $region10: #{tpu_custom_call.1} parent=5 // pred_check_branch
        %122 = sbr.rel (%p119) target = $region12
      $region11: #{tpu_custom_call.1} parent=5 // pred_region
        %s123 = ssub.s32 %s15, 1
        // Predicated region
        $region13: #{tpu_custom_call.1} parent=11 // pred_check
          %p124 = pneg %p62
        $region14: #{tpu_custom_call.1} parent=11 // pred_check_branch
          %126 = sbr.rel (%p124) target = $region16
        $region15: #{tpu_custom_call.1} parent=11 // pred_region
          _
        $region16: #{tpu_custom_call.1} parent=11 // pred_fallthru
          _
        // Predicated region
        $region17: #{tpu_custom_call.1} parent=11 // pred_check
          %p127 = pneg %p83
        $region18: #{tpu_custom_call.1} parent=11 // pred_check_branch
          %129 = sbr.rel (%p127) target = $region20
        $region19: #{tpu_custom_call.1} parent=11 // pred_region
          _
        $region20: #{tpu_custom_call.1} parent=11 // pred_fallthru
          _
      $region12: #{tpu_custom_call.1} parent=5 // pred_fallthru
        _
      %p130 = scmp.lt.s32.totalorder %s15, 2
      // Predicated region
      $region21: #{tpu_custom_call.1} parent=5 // pred_check
        %p131 = pneg %p130
      $region22: #{tpu_custom_call.1} parent=5 // pred_check_branch
        %133 = sbr.rel (%p131) target = $region24
      $region23: #{tpu_custom_call.1} parent=5 // pred_region
        // Predicated region
        $region25: #{tpu_custom_call.1} parent=23 // pred_check
          %p134 = pneg %p35
        $region26: #{tpu_custom_call.1} parent=23 // pred_check_branch
          %136 = sbr.rel (%p134) target = $region28
        $region27: #{tpu_custom_call.1} parent=23 // pred_region
          %s137 = sand.u32 %s25, 1
          %s138 = scalar_lea.sflag [#allocation3], %s137
          %s139 = sand.u32 %s25, 1
          %s140 = smul.addr %s139, 64
          %s141 = scalar_lea.vmem [#allocation2], %s140
          %s143 = ssub.s32 1024, 1024
          %144 = vsyncadd %s138, %s143
          %s145 = smul.addr %s15, 8
          %s146 = smul.addr %s145, 128
          %s147 = scalar_lea.hbm %s0, %s146
          %s148 = sshll.u32 %s141, 4
          %s149 = int_to_ptr.vmem [resolvable:$true] %s148
          %154 = dma.hbm_to_vmem [thread:$0]  %s147, 1024, %s149, %s138, 256, 256, 16
        $region28: #{tpu_custom_call.1} parent=23 // pred_fallthru
          _
      $region24: #{tpu_custom_call.1} parent=5 // pred_fallthru
        _
      %p155 = scmp.le.s32.totalorder 1, %s15
      %p156 = scmp.lt.s32.totalorder %s15, 3
      %p157 = pnand %p155, %p156
      %p158 = pneg %p157
      // Predicated region
      $region29: #{tpu_custom_call.1} parent=5 // pred_check
        _
      $region30: #{tpu_custom_call.1} parent=5 // pred_check_branch
        %160 = sbr.rel (%p157) target = $region32
      $region31: #{tpu_custom_call.1} parent=5 // pred_region
        %s161 = ssub.s32 %s15, 1
        %s162 = sand.u32 %s28, 1
        %s163 = scalar_lea.sflag [#allocation3], %s162
        %s164 = sand.u32 %s28, 1
        %s165 = smul.addr %s164, 64
        %s166 = scalar_lea.vmem [#allocation2], %s165
        // Predicated region
        $region33: #{tpu_custom_call.1} parent=31 // pred_check
          %p167 = pneg %p41
        $region34: #{tpu_custom_call.1} parent=31 // pred_check_branch
          %169 = sbr.rel (%p167) target = $region36
        $region35: #{tpu_custom_call.1} parent=31 // pred_region
          %170 = dma.done %s163, 1024
        $region36: #{tpu_custom_call.1} parent=31 // pred_fallthru
          _
        %s171 = sand.u32 %s28, 1
        %s172 = scalar_lea.sflag [#allocation3], %s171
        %s173 = sand.u32 %s28, 1
        %s174 = smul.addr %s173, 64
        %s175 = scalar_lea.vmem [#allocation2], %s174
        %p176 = pneg %p41
        %p177 = pneg %p38
        %p178 = pneg %p62
        %p179 = pneg %p59
        %p180 = pneg %p83
        %p181 = pneg %p80
        %p182 = pneg %p109
        %p183 = pneg %p106
        %s184 = sand.u32 %s96, 1
        %s185 = scalar_lea.sflag [#allocation4], %s184
        %s186 = sand.u32 %s96, 1
        %s187 = smul.addr %s186, 64
        %s188 = scalar_lea.vmem [#allocation5], %s187
        %v189 = vld [vmem:[%s166] sm:$0xff]
        %v190 = vld [vmem:[%s166 + $0x8] sm:$0xff]
        %v191 = vld [vmem:[%s166 + $0x10] sm:$0xff]
        %v192 = vld [vmem:[%s166 + $0x18] sm:$0xff]
        %v193 = vld [vmem:[%s166 + $0x20] sm:$0xff]
        %v194 = vld [vmem:[%s166 + $0x28] sm:$0xff]
        %v195 = vld [vmem:[%s166 + $0x30] sm:$0xff]
        %v196 = vld [vmem:[%s166 + $0x38] sm:$0xff]
        %v197 = vadd.f32 %v189, %v190
        %198 = vadd.xlane.f32.xlu0 %v197
        %v199 = vpop.xlane.xlu0 %198
        %v200 = vadd.f32 %v191, %v192
        %201 = vadd.xlane.f32.xlu0 %v200
        %v202 = vpop.xlane.xlu0 %201
        %v203 = vadd.f32 %v193, %v194
        %204 = vadd.xlane.f32.xlu0 %v203
        %v205 = vpop.xlane.xlu0 %204
        %v206 = vadd.f32 %v195, %v196
        %207 = vadd.xlane.f32.xlu0 %v206
        %v208 = vpop.xlane.xlu0 %207
        %v209 = vmul.f32 %v199, 0.00390625
        %v210 = vmul.f32 %v202, 0.00390625
        %v211 = vmul.f32 %v205, 0.00390625
        %v212 = vmul.f32 %v208, 0.00390625
        %v213 = vld [vmem:[%s1] sm:$0x3]
        %v214 = vld [vmem:[%s2] sm:$0xff]
        %v215 = vld [vmem:[%s2 + $0x8] sm:$0xff]
        %v216 = vld [vmem:[%s2 + $0x10] sm:$0xff]
        %v217 = vld [vmem:[%s2 + $0x18] sm:$0xff]
        %v222 = vlaneseq
        %v223 = vand.u32 %v222, 127
        %v224 = vlaneseq
        %v225 = vshrl.u32 %v224, 7
        %v226 = vsub.s32 %v223, %v225
        %v227 = vrot.slane %v209, %v226
        %v228 = vadd.s32 %v223, 4294967288
        %v229 = vlaneseq
        %v230 = vshrl.u32 %v229, 7
        %v231 = vsub.s32 %v228, %v230
        %v232 = vrot.slane %v210, %v231
        %vm233 = vcmask 130112
        %v234 = vsel %vm233, %v232, %v227
        %v235 = vadd.s32 %v223, 4294967280
        %v236 = vlaneseq
        %v237 = vshrl.u32 %v236, 7
        %v238 = vsub.s32 %v235, %v237
        %v239 = vrot.slane %v211, %v238
        %vm240 = vcmask 195712
        %v241 = vsel %vm240, %v239, %v234
        %v242 = vadd.s32 %v223, 4294967272
        %v243 = vlaneseq
        %v244 = vshrl.u32 %v243, 7
        %v245 = vsub.s32 %v242, %v244
        %v246 = vrot.slane %v212, %v245
        %vm247 = vcmask 261312
        %v248 = vsel %vm247, %v246, %v241
        %vm249 = vcmask 261120
        %v250 = vsel %vm249, %v248, 0
        %v253 = vsel %vm249, %v213, 0
        %255 = vmatprep.subr.mxu0 0.0
        %256 = vmatpush1.xpose.msra.mxu0 %v253
        %257 = vmatprep.subr.mxu0 0.0
        %258 = vmatpush1.xpose.msra.mxu0 0.0
        %259 = vmatprep.subr.mxu0 0.0
        %260 = vmatpush1.xpose.msra.mxu0 0.0
        %261 = vmatprep.subr.mxu0 0.0
        %262 = vmatpush1.xpose.msra.mxu0 0.0
        %263 = vmatprep.subr.mxu0 0.0
        %264 = vmatpush1.xpose.msra.mxu0 0.0
        %265 = vmatprep.subr.mxu0 0.0
        %266 = vmatpush1.xpose.msra.mxu0 0.0
        %267 = vmatprep.subr.mxu0 0.0
        %268 = vmatpush1.xpose.msra.mxu0 0.0
        %269 = vmatprep.subr.mxu0 0.0
        %270 = vmatpush1.xpose.msra.mxu0 0.0
        %271 = vmatprep.subr.mxu0 0.0
        %272 = vmatpush1.xpose.msra.mxu0 0.0
        %273 = vmatprep.subr.mxu0 0.0
        %274 = vmatpush1.xpose.msra.mxu0 0.0
        %275 = vmatprep.subr.mxu0 0.0
        %276 = vmatpush1.xpose.msra.mxu0 0.0
        %277 = vmatprep.subr.mxu0 0.0
        %278 = vmatpush1.xpose.msra.mxu0 0.0
        %279 = vmatprep.subr.mxu0 0.0
        %280 = vmatpush1.xpose.msra.mxu0 0.0
        %281 = vmatprep.subr.mxu0 0.0
        %282 = vmatpush1.xpose.msra.mxu0 0.0
        %283 = vmatprep.subr.mxu0 0.0
        %284 = vmatpush1.xpose.msra.mxu0 0.0
        %285 = vmatprep.subr.mxu0 0.0
        %286 = vmatpush1.xpose.msra.mxu0 0.0
        %287 = vmatprep.subr.mxu0 0.0
        %288 = vmatpush1.xpose.msra.mxu0 0.0
        %289 = vmatprep.subr.mxu0 0.0
        %290 = vmatpush1.xpose.msra.mxu0 0.0
        %291 = vmatprep.subr.mxu0 0.0
        %292 = vmatpush1.xpose.msra.mxu0 0.0
        %293 = vmatprep.subr.mxu0 0.0
        %294 = vmatpush1.xpose.msra.mxu0 0.0
        %295 = vmatprep.subr.mxu0 0.0
        %296 = vmatpush1.xpose.msra.mxu0 0.0
        %297 = vmatprep.subr.mxu0 0.0
        %298 = vmatpush1.xpose.msra.mxu0 0.0
        %299 = vmatprep.subr.mxu0 0.0
        %300 = vmatpush1.xpose.msra.mxu0 0.0
        %301 = vmatprep.subr.mxu0 0.0
        %302 = vmatpush1.xpose.msra.mxu0 0.0
        %303 = vmatprep.subr.mxu0 0.0
        %304 = vmatpush1.xpose.msra.mxu0 0.0
        %305 = vmatprep.subr.mxu0 0.0
        %306 = vmatpush1.xpose.msra.mxu0 0.0
        %307 = vmatprep.subr.mxu0 0.0
        %308 = vmatpush1.xpose.msra.mxu0 0.0
        %309 = vmatprep.subr.mxu0 0.0
        %310 = vmatpush1.xpose.msra.mxu0 0.0
        %311 = vmatprep.subr.mxu0 0.0
        %312 = vmatpush1.xpose.msra.mxu0 0.0
        %313 = vmatprep.subr.mxu0 0.0
        %314 = vmatpush1.xpose.msra.mxu0 0.0
        %315 = vmatprep.subr.mxu0 0.0
        %316 = vmatpush1.xpose.msra.mxu0 0.0
        %317 = vmatprep.subr.mxu0 0.0
        %318 = vmatpush1.xpose.msra.mxu0 0.0
        %319 = vmatprep.mubr.f32.mxu0 0.0
        %320 = vmatmul.mubr.f32.gmra.mrb[0].mxu0 %v250
        %v321 = vpop.f32.mrb[0].mxu0
        %v322 = vadd.f32 0.0, %v321
        %v323 = vpop.f32.mrb[0].mxu0
        %324 = vdwg.mxu0
        %v325 = vmax.f32 %v322, 0.0
        %vm326 = vcmask 15360
        %v328 = vsel %vm326, %v325, 0
        %v331 = vsel %vm326, %v214, 0
        %v334 = vsel %vm326, %v215, 0
        %v337 = vsel %vm326, %v216, 0
        %v340 = vsel %vm326, %v217, 0
        %342 = vmatprep.subr.mxu0 0.0
        %343 = vmatpush1.xpose.msra.mxu0 %v331
        %344 = vmatprep.subr.mxu0 0.0
        %345 = vmatpush1.xpose.msra.mxu0 %v334
        %346 = vmatprep.subr.mxu0 0.0
        %347 = vmatpush1.xpose.msra.mxu0 %v337
        %348 = vmatprep.subr.mxu0 0.0
        %349 = vmatpush1.xpose.msra.mxu0 %v340
        %350 = vmatprep.subr.mxu0 0.0
        %351 = vmatpush1.xpose.msra.mxu0 0.0
        %352 = vmatprep.subr.mxu0 0.0
        %353 = vmatpush1.xpose.msra.mxu0 0.0
        %354 = vmatprep.subr.mxu0 0.0
        %355 = vmatpush1.xpose.msra.mxu0 0.0
        %356 = vmatprep.subr.mxu0 0.0
        %357 = vmatpush1.xpose.msra.mxu0 0.0
        %358 = vmatprep.subr.mxu0 0.0
        %359 = vmatpush1.xpose.msra.mxu0 0.0
        %360 = vmatprep.subr.mxu0 0.0
        %361 = vmatpush1.xpose.msra.mxu0 0.0
        %362 = vmatprep.subr.mxu0 0.0
        %363 = vmatpush1.xpose.msra.mxu0 0.0
        %364 = vmatprep.subr.mxu0 0.0
        %365 = vmatpush1.xpose.msra.mxu0 0.0
        %366 = vmatprep.subr.mxu0 0.0
        %367 = vmatpush1.xpose.msra.mxu0 0.0
        %368 = vmatprep.subr.mxu0 0.0
        %369 = vmatpush1.xpose.msra.mxu0 0.0
        %370 = vmatprep.subr.mxu0 0.0
        %371 = vmatpush1.xpose.msra.mxu0 0.0
        %372 = vmatprep.subr.mxu0 0.0
        %373 = vmatpush1.xpose.msra.mxu0 0.0
        %374 = vmatprep.subr.mxu0 0.0
        %375 = vmatpush1.xpose.msra.mxu0 0.0
        %376 = vmatprep.subr.mxu0 0.0
        %377 = vmatpush1.xpose.msra.mxu0 0.0
        %378 = vmatprep.subr.mxu0 0.0
        %379 = vmatpush1.xpose.msra.mxu0 0.0
        %380 = vmatprep.subr.mxu0 0.0
        %381 = vmatpush1.xpose.msra.mxu0 0.0
        %382 = vmatprep.subr.mxu0 0.0
        %383 = vmatpush1.xpose.msra.mxu0 0.0
        %384 = vmatprep.subr.mxu0 0.0
        %385 = vmatpush1.xpose.msra.mxu0 0.0
        %386 = vmatprep.subr.mxu0 0.0
        %387 = vmatpush1.xpose.msra.mxu0 0.0
        %388 = vmatprep.subr.mxu0 0.0
        %389 = vmatpush1.xpose.msra.mxu0 0.0
        %390 = vmatprep.subr.mxu0 0.0
        %391 = vmatpush1.xpose.msra.mxu0 0.0
        %392 = vmatprep.subr.mxu0 0.0
        %393 = vmatpush1.xpose.msra.mxu0 0.0
        %394 = vmatprep.subr.mxu0 0.0
        %395 = vmatpush1.xpose.msra.mxu0 0.0
        %396 = vmatprep.subr.mxu0 0.0
        %397 = vmatpush1.xpose.msra.mxu0 0.0
        %398 = vmatprep.subr.mxu0 0.0
        %399 = vmatpush1.xpose.msra.mxu0 0.0
        %400 = vmatprep.subr.mxu0 0.0
        %401 = vmatpush1.xpose.msra.mxu0 0.0
        %402 = vmatprep.subr.mxu0 0.0
        %403 = vmatpush1.xpose.msra.mxu0 0.0
        %404 = vmatprep.subr.mxu0 0.0
        %405 = vmatpush1.xpose.msra.mxu0 0.0
        %406 = vmatprep.mubr.f32.mxu0 0.0
        %407 = vmatmul.mubr.f32.gmra.mrb[0].mxu0 %v328
        %v408 = vpop.f32.mrb[0].mxu0
        %v409 = vadd.f32 0.0, %v408
        %v410 = vpop.f32.mrb[0].mxu0
        %411 = vdwg.mxu0
        %v412 = vxor.u32 %v409, 2147483648
        %v413 = vmul.f32 %v412, 1.442695
        %v414 = vpow.pop %v413
        %v415 = vadd.f32 %v414, 1.0
        %v416 = vrcp.pop %v415
        %v417 = vmul.f32 1.0, %v416
        %v418 = vlaneseq
        %v419 = vshrl.u32 %v418, 7
        %v420 = vsub.s32 0, %v419
        %v421 = vrot.slane %v417, %v420
        %423 = vbcast.lane.b32.xlu0 %v421, 256
        %v424 = vpop.permute.xlu0 %423
        %s426 = sor.u32 256, 8
        %427 = vbcast.lane.b32.xlu0 %v421, %s426
        %v428 = vpop.permute.xlu0 %427
        %s430 = sor.u32 256, 16
        %431 = vbcast.lane.b32.xlu0 %v421, %s430
        %v432 = vpop.permute.xlu0 %431
        %s434 = sor.u32 256, 24
        %435 = vbcast.lane.b32.xlu0 %v421, %s434
        %v436 = vpop.permute.xlu0 %435
        %v437 = vmul.f32 %v189, %v424
        %v438 = vmul.f32 %v190, %v424
        %v439 = vmul.f32 %v191, %v428
        %v440 = vmul.f32 %v192, %v428
        %v441 = vmul.f32 %v193, %v432
        %v442 = vmul.f32 %v194, %v432
        %v443 = vmul.f32 %v195, %v436
        %v444 = vmul.f32 %v196, %v436
        %445 = vst [vmem:[%s188] sm:$0xff] %v437
        %446 = vst [vmem:[%s188 + $0x8] sm:$0xff] %v438
        %447 = vst [vmem:[%s188 + $0x10] sm:$0xff] %v439
        %448 = vst [vmem:[%s188 + $0x18] sm:$0xff] %v440
        %449 = vst [vmem:[%s188 + $0x20] sm:$0xff] %v441
        %450 = vst [vmem:[%s188 + $0x28] sm:$0xff] %v442
        %451 = vst [vmem:[%s188 + $0x30] sm:$0xff] %v443
        %452 = vst [vmem:[%s188 + $0x38] sm:$0xff] %v444
        %s453 = sand.u32 %s96, 1
        %s454 = scalar_lea.sflag [#allocation4], %s453
        %s455 = sand.u32 %s96, 1
        %s456 = smul.addr %s455, 64
        %s457 = scalar_lea.vmem [#allocation5], %s456
        // Predicated region
        $region37: #{tpu_custom_call.1} parent=31 // pred_check
          %p458 = pneg %p106
        $region38: #{tpu_custom_call.1} parent=31 // pred_check_branch
          %460 = sbr.rel (%p458) target = $region40
        $region39: #{tpu_custom_call.1} parent=31 // pred_region
          %s462 = ssub.s32 1024, 1024
          %463 = vsyncadd %s454, %s462
          %s464 = smul.addr %s20, 8
          %s465 = smul.addr %s464, 128
          %s466 = scalar_lea.hbm %s3, %s465
          %s467 = sshll.u32 %s457, 4
          %s468 = int_to_ptr.vmem [resolvable:$true] %s467
          %473 = dma.vmem_to_hbm [thread:$0]  %s468, 1024, %s466, %s454, 256, 256, 16
        $region40: #{tpu_custom_call.1} parent=31 // pred_fallthru
          _
      $region32: #{tpu_custom_call.1} parent=5 // pred_fallthru
        _
      %p474 = scmp.le.s32.totalorder 2, %s15
      // Predicated region
      $region41: #{tpu_custom_call.1} parent=5 // pred_check
        %p475 = pneg %p474
      $region42: #{tpu_custom_call.1} parent=5 // pred_check_branch
        %477 = sbr.rel (%p475) target = $region44
      $region43: #{tpu_custom_call.1} parent=5 // pred_region
        %s478 = ssub.s32 %s15, 2
        // Predicated region
        $region45: #{tpu_custom_call.1} parent=43 // pred_check
          %p479 = pneg %p112
        $region46: #{tpu_custom_call.1} parent=43 // pred_check_branch
          %481 = sbr.rel (%p479) target = $region48
        $region47: #{tpu_custom_call.1} parent=43 // pred_region
          %s482 = sand.u32 %s97, 1
          %s483 = scalar_lea.sflag [#allocation4], %s482
          %s484 = sand.u32 %s97, 1
          %s485 = smul.addr %s484, 64
          %s486 = scalar_lea.vmem [#allocation5], %s485
          %487 = dma.done %s483, 1024
        $region48: #{tpu_custom_call.1} parent=43 // pred_fallthru
          _
      $region44: #{tpu_custom_call.1} parent=5 // pred_fallthru
        _
    $region6: #{tpu_custom_call.1} parent=1 // loop_footer
      %s19 = sadd.s32 1, %s15
    $region7: #{tpu_custom_call.1} parent=1 // loop_footer_branch
      %14 = sbr.rel target = $region3
    $region8: #{tpu_custom_call.1} parent=1 // loop_exit
      _
    %488 = vsyncpa [#allocation3], 1
    %s489 = scalar_lea.sflag [#allocation3], 1
    %490 = vsyncpa %s489, 1
    %491 = vsyncpa [#allocation4], 1
    %s492 = scalar_lea.sflag [#allocation4], 1
    %493 = vsyncpa %s492, 1

// kernel: tpu_custom_call.1
$region0: #{tpu_custom_call.1}
  #allocation0 [shape = 'u32[]', space=smem, size = 0x4, offset = 0x4, fixed_abs, tag = 'smem constant byte address 0x4 - core index']
  #allocation1 [shape = 'u32[144,128]{1,0:T(1,128)}', space=vmem, size = 0x12000, scoped, tag = 'internal scratch']
  %s0 = inlined_call_operand.hbm [shape: f32[2,32,256], index: 0, kind: input, shape index: {}]
  %s1 = inlined_call_operand.vmem [shape: f32[2,32], index: 1, kind: input, shape index: {}]
  %s2 = inlined_call_operand.vmem [shape: f32[32,2], index: 2, kind: input, shape index: {}]
  %s3 = inlined_call_operand.hbm [shape: f32[2,32,256], index: 3, kind: output, shape index: {}]
  %s4 = sld [smem:[#allocation0]]
  $region49: #{tpu_custom_call.1} parent=0
    _
  %s6 = ssub.s32 1, %s4
  %s7 = scalar_select 0, %s6, %s4
  $region1: #{tpu_custom_call.1} parent=0
    #allocation2 [shape = 'u8[65536]{0}', space=vmem, size = 0x10000, scoped, tag = 'input window, operand 0']
    #allocation3 [shape = 's32[2]{0}', space=sflag, size = 0x8, scoped, tag = 'scoped memory for tpu_custom_call.1']
    #allocation4 [shape = 's32[2]{0}', space=sflag, size = 0x8, scoped, tag = 'scoped memory for tpu_custom_call.1']
    #allocation5 [shape = 'u8[65536]{0}', space=vmem, size = 0x10000, scoped, tag = 'output window, operand 0']
    %8 = vsyncpa [#allocation3], 0
    %s9 = scalar_lea.sflag [#allocation3], 1
    %10 = vsyncpa %s9, 0
    %11 = vsyncpa [#allocation4], 0
    %s12 = scalar_lea.sflag [#allocation4], 1
    %13 = vsyncpa %s12, 0
    loop: start=0, step=1, limit=4
    $region2: #{tpu_custom_call.1} parent=1 // loop_pre_header
      _
    $region3: #{tpu_custom_call.1} parent=1 // loop_header
      %s15 = sphi 0, %s19
      %p16 = scmp.ge.s32.totalorder %s15, 4
      %s25 = sphi 0, %s27
      %s28 = sphi 0, %s25
      %s29 = sphi 0, %s28
      %s45 = sphi 0, %s29
      %s49 = sphi 0, %s49
      %s51 = sphi 0, %s49
      %s52 = sphi 0, %s51
      %s66 = sphi 0, %s52
      %s70 = sphi 0, %s70
      %s72 = sphi 0, %s70
      %s73 = sphi 0, %s72
      %s87 = sphi 0, %s73
      %s93 = sphi 0, %s95
      %s96 = sphi 0, %s93
      %s97 = sphi 0, %s96
      %s113 = sphi 0, %s97
    $region4: #{tpu_custom_call.1} parent=1 // loop_header_branch
      %18 = sbr.rel (%p16) target = $region8
    $region5: #{tpu_custom_call.1} parent=1 // loop_body
      %s20 = ssub.s32 %s15, 1
      %s21 = ssub.s32 %s15, 2
      %s22 = sadd.s32 %s15, 1
      %s23 = ssub.s32 %s15, %s22
      %p24 = scmp.eq.s32.totalorder %s23, 0
      %s26 = sadd.s32 %s25, 1
      %s27 = scalar_select %p24, %s25, %s26
      %p30 = pneg %p24
      %p31 = scmp.eq.s32.totalorder %s15, 1
      %p32 = por %p30, %p31
      %p33 = scmp.ne.s32.totalorder %s25, %s28
      %p34 = scmp.eq.s32.totalorder %s15, 0
      %p35 = por %p33, %p34
      %p36 = scmp.ne.s32.totalorder %s25, %s28
      %p37 = scmp.eq.s32.totalorder %s20, 1
      %p38 = por %p36, %p37
      %p39 = scmp.ne.s32.totalorder %s28, %s29
      %p40 = scmp.eq.s32.totalorder %s20, 0
      %p41 = por %p39, %p40
      %p42 = scmp.ne.s32.totalorder %s28, %s29
      %p43 = scmp.eq.s32.totalorder %s21, 1
      %p44 = por %p42, %p43
      %p46 = scmp.ne.s32.totalorder %s29, %s45
      %p47 = scmp.eq.s32.totalorder %s21, 0
      %p48 = por %p46, %p47
      %s50 = sadd.s32 %s49, 1
      %p53 = scmp.eq.s32.totalorder %s15, 1
      %p54 = scmp.ne.s32.totalorder %s49, %s51
      %p55 = scmp.eq.s32.totalorder %s15, 0
      %p56 = por %p54, %p55
      %p57 = scmp.ne.s32.totalorder %s49, %s51
      %p58 = scmp.eq.s32.totalorder %s20, 1
      %p59 = por %p57, %p58
      %p60 = scmp.ne.s32.totalorder %s51, %s52
      %p61 = scmp.eq.s32.totalorder %s20, 0
      %p62 = por %p60, %p61
      %p63 = scmp.ne.s32.totalorder %s51, %s52
      %p64 = scmp.eq.s32.totalorder %s21, 1
      %p65 = por %p63, %p64
      %p67 = scmp.ne.s32.totalorder %s52, %s66
      %p68 = scmp.eq.s32.totalorder %s21, 0
      %p69 = por %p67, %p68
      %s71 = sadd.s32 %s70, 1
      %p74 = scmp.eq.s32.totalorder %s15, 1
      %p75 = scmp.ne.s32.totalorder %s70, %s72
      %p76 = scmp.eq.s32.totalorder %s15, 0
      %p77 = por %p75, %p76
      %p78 = scmp.ne.s32.totalorder %s70, %s72
      %p79 = scmp.eq.s32.totalorder %s20, 1
      %p80 = por %p78, %p79
      %p81 = scmp.ne.s32.totalorder %s72, %s73
      %p82 = scmp.eq.s32.totalorder %s20, 0
      %p83 = por %p81, %p82
      %p84 = scmp.ne.s32.totalorder %s72, %s73
      %p85 = scmp.eq.s32.totalorder %s21, 1
      %p86 = por %p84, %p85
      %p88 = scmp.ne.s32.totalorder %s73, %s87
      %p89 = scmp.eq.s32.totalorder %s21, 0
      %p90 = por %p88, %p89
      %s91 = ssub.s32 %s15, %s22
      %p92 = scmp.eq.s32.totalorder %s91, 0
      %s94 = sadd.s32 %s93, 1
      %s95 = scalar_select %p92, %s93, %s94
      %p98 = pneg %p92
      %p99 = scmp.eq.s32.totalorder %s15, 1
      %p100 = por %p98, %p99
      %p101 = scmp.ne.s32.totalorder %s93, %s96
      %p102 = scmp.eq.s32.totalorder %s15, 0
      %p103 = por %p101, %p102
      %p104 = scmp.ne.s32.totalorder %s93, %s96
      %p105 = scmp.eq.s32.totalorder %s20, 1
      %p106 = por %p104, %p105
      %p107 = scmp.ne.s32.totalorder %s96, %s97
      %p108 = scmp.eq.s32.totalorder %s20, 0
      %p109 = por %p107, %p108
      %p110 = scmp.ne.s32.totalorder %s96, %s97
      %p111 = scmp.eq.s32.totalorder %s21, 1
      %p112 = por %p110, %p111
      %p114 = scmp.ne.s32.totalorder %s97, %s113
      %p115 = scmp.eq.s32.totalorder %s21, 0
      %p116 = por %p114, %p115
      %p117 = scmp.le.s32.totalorder 1, %s15
      %p118 = scmp.lt.s32.totalorder %s15, 3
      %p119 = pnand %p117, %p118
      %p120 = pneg %p119
      // Predicated region
      $region9: #{tpu_custom_call.1} parent=5 // pred_check
        _
      $region10: #{tpu_custom_call.1} parent=5 // pred_check_branch
        %122 = sbr.rel (%p119) target = $region12
      $region11: #{tpu_custom_call.1} parent=5 // pred_region
        %s123 = ssub.s32 %s15, 1
        // Predicated region
        $region13: #{tpu_custom_call.1} parent=11 // pred_check
          %p124 = pneg %p62
        $region14: #{tpu_custom_call.1} parent=11 // pred_check_branch
          %126 = sbr.rel (%p124) target = $region16
        $region15: #{tpu_custom_call.1} parent=11 // pred_region
          _
        $region16: #{tpu_custom_call.1} parent=11 // pred_fallthru
          _
        // Predicated region
        $region17: #{tpu_custom_call.1} parent=11 // pred_check
          %p127 = pneg %p83
        $region18: #{tpu_custom_call.1} parent=11 // pred_check_branch
          %129 = sbr.rel (%p127) target = $region20
        $region19: #{tpu_custom_call.1} parent=11 // pred_region
          _
        $region20: #{tpu_custom_call.1} parent=11 // pred_fallthru
          _
      $region12: #{tpu_custom_call.1} parent=5 // pred_fallthru
        _
      %p130 = scmp.lt.s32.totalorder %s15, 2
      // Predicated region
      $region21: #{tpu_custom_call.1} parent=5 // pred_check
        %p131 = pneg %p130
      $region22: #{tpu_custom_call.1} parent=5 // pred_check_branch
        %133 = sbr.rel (%p131) target = $region24
      $region23: #{tpu_custom_call.1} parent=5 // pred_region
        // Predicated region
        $region25: #{tpu_custom_call.1} parent=23 // pred_check
          %p134 = pneg %p35
        $region26: #{tpu_custom_call.1} parent=23 // pred_check_branch
          %136 = sbr.rel (%p134) target = $region28
        $region27: #{tpu_custom_call.1} parent=23 // pred_region
          %s137 = sand.u32 %s25, 1
          %s138 = scalar_lea.sflag [#allocation3], %s137
          %s139 = sand.u32 %s25, 1
          %s140 = smul.addr %s139, 64
          %s141 = scalar_lea.vmem [#allocation2], %s140
          %s143 = ssub.s32 1024, 1024
          %144 = vsyncadd %s138, %s143
          %s145 = smul.addr %s15, 8
          %s146 = smul.addr %s145, 128
          %s147 = scalar_lea.hbm %s0, %s146
          %s148 = sshll.u32 %s141, 4
          %s149 = int_to_ptr.vmem [resolvable:$true] %s148
          %154 = dma.hbm_to_vmem [thread:$0]  %s147, 1024, %s149, %s138, 256, 256, 16
        $region28: #{tpu_custom_call.1} parent=23 // pred_fallthru
          _
      $region24: #{tpu_custom_call.1} parent=5 // pred_fallthru
        _
      %p155 = scmp.le.s32.totalorder 1, %s15
      %p156 = scmp.lt.s32.totalorder %s15, 3
      %p157 = pnand %p155, %p156
      %p158 = pneg %p157
      // Predicated region
      $region29: #{tpu_custom_call.1} parent=5 // pred_check
        _
      $region30: #{tpu_custom_call.1} parent=5 // pred_check_branch
        %160 = sbr.rel (%p157) target = $region32
      $region31: #{tpu_custom_call.1} parent=5 // pred_region
        %s161 = ssub.s32 %s15, 1
        %s162 = sand.u32 %s28, 1
        %s163 = scalar_lea.sflag [#allocation3], %s162
        %s164 = sand.u32 %s28, 1
        %s165 = smul.addr %s164, 64
        %s166 = scalar_lea.vmem [#allocation2], %s165
        // Predicated region
        $region33: #{tpu_custom_call.1} parent=31 // pred_check
          %p167 = pneg %p41
        $region34: #{tpu_custom_call.1} parent=31 // pred_check_branch
          %169 = sbr.rel (%p167) target = $region36
        $region35: #{tpu_custom_call.1} parent=31 // pred_region
          %170 = dma.done %s163, 1024
        $region36: #{tpu_custom_call.1} parent=31 // pred_fallthru
          _
        %s171 = sand.u32 %s28, 1
        %s172 = scalar_lea.sflag [#allocation3], %s171
        %s173 = sand.u32 %s28, 1
        %s174 = smul.addr %s173, 64
        %s175 = scalar_lea.vmem [#allocation2], %s174
        %p176 = pneg %p41
        %p177 = pneg %p38
        %p178 = pneg %p62
        %p179 = pneg %p59
        %p180 = pneg %p83
        %p181 = pneg %p80
        %p182 = pneg %p109
        %p183 = pneg %p106
        %s184 = sand.u32 %s96, 1
        %s185 = scalar_lea.sflag [#allocation4], %s184
        %s186 = sand.u32 %s96, 1
        %s187 = smul.addr %s186, 64
        %s188 = scalar_lea.vmem [#allocation5], %s187
        %v189 = vld [vmem:[%s166] sm:$0xff]
        %v190 = vld [vmem:[%s166 + $0x8] sm:$0xff]
        %v191 = vld [vmem:[%s166 + $0x10] sm:$0xff]
        %v192 = vld [vmem:[%s166 + $0x18] sm:$0xff]
        %v193 = vld [vmem:[%s166 + $0x20] sm:$0xff]
        %v194 = vld [vmem:[%s166 + $0x28] sm:$0xff]
        %v195 = vld [vmem:[%s166 + $0x30] sm:$0xff]
        %v196 = vld [vmem:[%s166 + $0x38] sm:$0xff]
        %v197 = vadd.f32 %v189, %v190
        %198 = vadd.xlane.f32.xlu0 %v197
        %v199 = vpop.xlane.xlu0 %198
        %v200 = vadd.f32 %v191, %v192
        %201 = vadd.xlane.f32.xlu0 %v200
        %v202 = vpop.xlane.xlu0 %201
        %v203 = vadd.f32 %v193, %v194
        %204 = vadd.xlane.f32.xlu0 %v203
        %v205 = vpop.xlane.xlu0 %204
        %v206 = vadd.f32 %v195, %v196
        %207 = vadd.xlane.f32.xlu0 %v206
        %v208 = vpop.xlane.xlu0 %207
        %v209 = vmul.f32 %v199, 0.00390625
        %v210 = vmul.f32 %v202, 0.00390625
        %v211 = vmul.f32 %v205, 0.00390625
        %v212 = vmul.f32 %v208, 0.00390625
        %v213 = vld [vmem:[%s1] sm:$0x3]
        %v214 = vld [vmem:[%s2] sm:$0xff]
        %v215 = vld [vmem:[%s2 + $0x8] sm:$0xff]
        %v216 = vld [vmem:[%s2 + $0x10] sm:$0xff]
        %v217 = vld [vmem:[%s2 + $0x18] sm:$0xff]
        %v222 = vlaneseq
        %v223 = vand.u32 %v222, 127
        %v224 = vlaneseq
        %v225 = vshrl.u32 %v224, 7
        %v226 = vsub.s32 %v223, %v225
        %v227 = vrot.slane %v209, %v226
        %v228 = vadd.s32 %v223, 4294967288
        %v229 = vlaneseq
        %v230 = vshrl.u32 %v229, 7
        %v231 = vsub.s32 %v228, %v230
        %v232 = vrot.slane %v210, %v231
        %vm233 = vcmask 130112
        %v234 = vsel %vm233, %v232, %v227
        %v235 = vadd.s32 %v223, 4294967280
        %v236 = vlaneseq
        %v237 = vshrl.u32 %v236, 7
        %v238 = vsub.s32 %v235, %v237
        %v239 = vrot.slane %v211, %v238
        %vm240 = vcmask 195712
        %v241 = vsel %vm240, %v239, %v234
        %v242 = vadd.s32 %v223, 4294967272
        %v243 = vlaneseq
        %v244 = vshrl.u32 %v243, 7
        %v245 = vsub.s32 %v242, %v244
        %v246 = vrot.slane %v212, %v245
        %vm247 = vcmask 261312
        %v248 = vsel %vm247, %v246, %v241
        %vm249 = vcmask 261120
        %v250 = vsel %vm249, %v248, 0
        %v253 = vsel %vm249, %v213, 0
        %255 = vmatprep.subr.mxu0 0.0
        %256 = vmatpush1.xpose.msra.mxu0 %v253
        %257 = vmatprep.subr.mxu0 0.0
        %258 = vmatpush1.xpose.msra.mxu0 0.0
        %259 = vmatprep.subr.mxu0 0.0
        %260 = vmatpush1.xpose.msra.mxu0 0.0
        %261 = vmatprep.subr.mxu0 0.0
        %262 = vmatpush1.xpose.msra.mxu0 0.0
        %263 = vmatprep.subr.mxu0 0.0
        %264 = vmatpush1.xpose.msra.mxu0 0.0
        %265 = vmatprep.subr.mxu0 0.0
        %266 = vmatpush1.xpose.msra.mxu0 0.0
        %267 = vmatprep.subr.mxu0 0.0
        %268 = vmatpush1.xpose.msra.mxu0 0.0
        %269 = vmatprep.subr.mxu0 0.0
        %270 = vmatpush1.xpose.msra.mxu0 0.0
        %271 = vmatprep.subr.mxu0 0.0
        %272 = vmatpush1.xpose.msra.mxu0 0.0
        %273 = vmatprep.subr.mxu0 0.0
        %274 = vmatpush1.xpose.msra.mxu0 0.0
        %275 = vmatprep.subr.mxu0 0.0
        %276 = vmatpush1.xpose.msra.mxu0 0.0
        %277 = vmatprep.subr.mxu0 0.0
        %278 = vmatpush1.xpose.msra.mxu0 0.0
        %279 = vmatprep.subr.mxu0 0.0
        %280 = vmatpush1.xpose.msra.mxu0 0.0
        %281 = vmatprep.subr.mxu0 0.0
        %282 = vmatpush1.xpose.msra.mxu0 0.0
        %283 = vmatprep.subr.mxu0 0.0
        %284 = vmatpush1.xpose.msra.mxu0 0.0
        %285 = vmatprep.subr.mxu0 0.0
        %286 = vmatpush1.xpose.msra.mxu0 0.0
        %287 = vmatprep.subr.mxu0 0.0
        %288 = vmatpush1.xpose.msra.mxu0 0.0
        %289 = vmatprep.subr.mxu0 0.0
        %290 = vmatpush1.xpose.msra.mxu0 0.0
        %291 = vmatprep.subr.mxu0 0.0
        %292 = vmatpush1.xpose.msra.mxu0 0.0
        %293 = vmatprep.subr.mxu0 0.0
        %294 = vmatpush1.xpose.msra.mxu0 0.0
        %295 = vmatprep.subr.mxu0 0.0
        %296 = vmatpush1.xpose.msra.mxu0 0.0
        %297 = vmatprep.subr.mxu0 0.0
        %298 = vmatpush1.xpose.msra.mxu0 0.0
        %299 = vmatprep.subr.mxu0 0.0
        %300 = vmatpush1.xpose.msra.mxu0 0.0
        %301 = vmatprep.subr.mxu0 0.0
        %302 = vmatpush1.xpose.msra.mxu0 0.0
        %303 = vmatprep.subr.mxu0 0.0
        %304 = vmatpush1.xpose.msra.mxu0 0.0
        %305 = vmatprep.subr.mxu0 0.0
        %306 = vmatpush1.xpose.msra.mxu0 0.0
        %307 = vmatprep.subr.mxu0 0.0
        %308 = vmatpush1.xpose.msra.mxu0 0.0
        %309 = vmatprep.subr.mxu0 0.0
        %310 = vmatpush1.xpose.msra.mxu0 0.0
        %311 = vmatprep.subr.mxu0 0.0
        %312 = vmatpush1.xpose.msra.mxu0 0.0
        %313 = vmatprep.subr.mxu0 0.0
        %314 = vmatpush1.xpose.msra.mxu0 0.0
        %315 = vmatprep.subr.mxu0 0.0
        %316 = vmatpush1.xpose.msra.mxu0 0.0
        %317 = vmatprep.subr.mxu0 0.0
        %318 = vmatpush1.xpose.msra.mxu0 0.0
        %319 = vmatprep.mubr.f32.mxu0 0.0
        %320 = vmatmul.mubr.f32.gmra.mrb[0].mxu0 %v250
        %v321 = vpop.f32.mrb[0].mxu0
        %v322 = vadd.f32 0.0, %v321
        %v323 = vpop.f32.mrb[0].mxu0
        %324 = vdwg.mxu0
        %v325 = vmax.f32 %v322, 0.0
        %vm326 = vcmask 15360
        %v328 = vsel %vm326, %v325, 0
        %v331 = vsel %vm326, %v214, 0
        %v334 = vsel %vm326, %v215, 0
        %v337 = vsel %vm326, %v216, 0
        %v340 = vsel %vm326, %v217, 0
        %342 = vmatprep.subr.mxu0 0.0
        %343 = vmatpush1.xpose.msra.mxu0 %v331
        %344 = vmatprep.subr.mxu0 0.0
        %345 = vmatpush1.xpose.msra.mxu0 %v334
        %346 = vmatprep.subr.mxu0 0.0
        %347 = vmatpush1.xpose.msra.mxu0 %v337
        %348 = vmatprep.subr.mxu0 0.0
        %349 = vmatpush1.xpose.msra.mxu0 %v340
        %350 = vmatprep.subr.mxu0 0.0
        %351 = vmatpush1.xpose.msra.mxu0 0.0
        %352 = vmatprep.subr.mxu0 0.0
        %353 = vmatpush1.xpose.msra.mxu0 0.0
        %354 = vmatprep.subr.mxu0 0.0
        %355 = vmatpush1.xpose.msra.mxu0 0.0
        %356 = vmatprep.subr.mxu0 0.0
        %357 = vmatpush1.xpose.msra.mxu0 0.0
        %358 = vmatprep.subr.mxu0 0.0
        %359 = vmatpush1.xpose.msra.mxu0 0.0
        %360 = vmatprep.subr.mxu0 0.0
        %361 = vmatpush1.xpose.msra.mxu0 0.0
        %362 = vmatprep.subr.mxu0 0.0
        %363 = vmatpush1.xpose.msra.mxu0 0.0
        %364 = vmatprep.subr.mxu0 0.0
        %365 = vmatpush1.xpose.msra.mxu0 0.0
        %366 = vmatprep.subr.mxu0 0.0
        %367 = vmatpush1.xpose.msra.mxu0 0.0
        %368 = vmatprep.subr.mxu0 0.0
        %369 = vmatpush1.xpose.msra.mxu0 0.0
        %370 = vmatprep.subr.mxu0 0.0
        %371 = vmatpush1.xpose.msra.mxu0 0.0
        %372 = vmatprep.subr.mxu0 0.0
        %373 = vmatpush1.xpose.msra.mxu0 0.0
        %374 = vmatprep.subr.mxu0 0.0
        %375 = vmatpush1.xpose.msra.mxu0 0.0
        %376 = vmatprep.subr.mxu0 0.0
        %377 = vmatpush1.xpose.msra.mxu0 0.0
        %378 = vmatprep.subr.mxu0 0.0
        %379 = vmatpush1.xpose.msra.mxu0 0.0
        %380 = vmatprep.subr.mxu0 0.0
        %381 = vmatpush1.xpose.msra.mxu0 0.0
        %382 = vmatprep.subr.mxu0 0.0
        %383 = vmatpush1.xpose.msra.mxu0 0.0
        %384 = vmatprep.subr.mxu0 0.0
        %385 = vmatpush1.xpose.msra.mxu0 0.0
        %386 = vmatprep.subr.mxu0 0.0
        %387 = vmatpush1.xpose.msra.mxu0 0.0
        %388 = vmatprep.subr.mxu0 0.0
        %389 = vmatpush1.xpose.msra.mxu0 0.0
        %390 = vmatprep.subr.mxu0 0.0
        %391 = vmatpush1.xpose.msra.mxu0 0.0
        %392 = vmatprep.subr.mxu0 0.0
        %393 = vmatpush1.xpose.msra.mxu0 0.0
        %394 = vmatprep.subr.mxu0 0.0
        %395 = vmatpush1.xpose.msra.mxu0 0.0
        %396 = vmatprep.subr.mxu0 0.0
        %397 = vmatpush1.xpose.msra.mxu0 0.0
        %398 = vmatprep.subr.mxu0 0.0
        %399 = vmatpush1.xpose.msra.mxu0 0.0
        %400 = vmatprep.subr.mxu0 0.0
        %401 = vmatpush1.xpose.msra.mxu0 0.0
        %402 = vmatprep.subr.mxu0 0.0
        %403 = vmatpush1.xpose.msra.mxu0 0.0
        %404 = vmatprep.subr.mxu0 0.0
        %405 = vmatpush1.xpose.msra.mxu0 0.0
        %406 = vmatprep.mubr.f32.mxu0 0.0
        %407 = vmatmul.mubr.f32.gmra.mrb[0].mxu0 %v328
        %v408 = vpop.f32.mrb[0].mxu0
        %v409 = vadd.f32 0.0, %v408
        %v410 = vpop.f32.mrb[0].mxu0
        %411 = vdwg.mxu0
        %v412 = vxor.u32 %v409, 2147483648
        %v413 = vmul.f32 %v412, 1.442695
        %v414 = vpow.pop %v413
        %v415 = vadd.f32 %v414, 1.0
        %v416 = vrcp.pop %v415
        %v417 = vmul.f32 1.0, %v416
        %v418 = vlaneseq
        %v419 = vshrl.u32 %v418, 7
        %v420 = vsub.s32 0, %v419
        %v421 = vrot.slane %v417, %v420
        %423 = vbcast.lane.b32.xlu0 %v421, 256
        %v424 = vpop.permute.xlu0 %423
        %s426 = sor.u32 256, 8
        %427 = vbcast.lane.b32.xlu0 %v421, %s426
        %v428 = vpop.permute.xlu0 %427
        %s430 = sor.u32 256, 16
        %431 = vbcast.lane.b32.xlu0 %v421, %s430
        %v432 = vpop.permute.xlu0 %431
        %s434 = sor.u32 256, 24
        %435 = vbcast.lane.b32.xlu0 %v421, %s434
        %v436 = vpop.permute.xlu0 %435
        %v437 = vmul.f32 %v189, %v424
        %v438 = vmul.f32 %v190, %v424
        %v439 = vmul.f32 %v191, %v428
        %v440 = vmul.f32 %v192, %v428
        %v441 = vmul.f32 %v193, %v432
        %v442 = vmul.f32 %v194, %v432
        %v443 = vmul.f32 %v195, %v436
        %v444 = vmul.f32 %v196, %v436
        %445 = vst [vmem:[%s188] sm:$0xff] %v437
        %446 = vst [vmem:[%s188 + $0x8] sm:$0xff] %v438
        %447 = vst [vmem:[%s188 + $0x10] sm:$0xff] %v439
        %448 = vst [vmem:[%s188 + $0x18] sm:$0xff] %v440
        %449 = vst [vmem:[%s188 + $0x20] sm:$0xff] %v441
        %450 = vst [vmem:[%s188 + $0x28] sm:$0xff] %v442
        %451 = vst [vmem:[%s188 + $0x30] sm:$0xff] %v443
        %452 = vst [vmem:[%s188 + $0x38] sm:$0xff] %v444
        %s453 = sand.u32 %s96, 1
        %s454 = scalar_lea.sflag [#allocation4], %s453
        %s455 = sand.u32 %s96, 1
        %s456 = smul.addr %s455, 64
        %s457 = scalar_lea.vmem [#allocation5], %s456
        // Predicated region
        $region37: #{tpu_custom_call.1} parent=31 // pred_check
          %p458 = pneg %p106
        $region38: #{tpu_custom_call.1} parent=31 // pred_check_branch
          %460 = sbr.rel (%p458) target = $region40
        $region39: #{tpu_custom_call.1} parent=31 // pred_region
          %s462 = ssub.s32 1024, 1024
          %463 = vsyncadd %s454, %s462
          %s464 = smul.addr %s20, 8
          %s465 = smul.addr %s464, 128
          %s466 = scalar_lea.hbm %s3, %s465
          %s467 = sshll.u32 %s457, 4
          %s468 = int_to_ptr.vmem [resolvable:$true] %s467
          %473 = dma.vmem_to_hbm [thread:$0]  %s468, 1024, %s466, %s454, 256, 256, 16
        $region40: #{tpu_custom_call.1} parent=31 // pred_fallthru
          _
      $region32: #{tpu_custom_call.1} parent=5 // pred_fallthru
        _
      %p474 = scmp.le.s32.totalorder 2, %s15
      // Predicated region
      $region41: #{tpu_custom_call.1} parent=5 // pred_check
        %p475 = pneg %p474
      $region42: #{tpu_custom_call.1} parent=5 // pred_check_branch
        %477 = sbr.rel (%p475) target = $region44
      $region43: #{tpu_custom_call.1} parent=5 // pred_region
        %s478 = ssub.s32 %s15, 2
        // Predicated region
        $region45: #{tpu_custom_call.1} parent=43 // pred_check
          %p479 = pneg %p112
        $region46: #{tpu_custom_call.1} parent=43 // pred_check_branch
          %481 = sbr.rel (%p479) target = $region48
        $region47: #{tpu_custom_call.1} parent=43 // pred_region
          %s482 = sand.u32 %s97, 1
          %s483 = scalar_lea.sflag [#allocation4], %s482
          %s484 = sand.u32 %s97, 1
          %s485 = smul.addr %s484, 64
          %s486 = scalar_lea.vmem [#allocation5], %s485
          %487 = dma.done %s483, 1024
        $region48: #{tpu_custom_call.1} parent=43 // pred_fallthru
          _
      $region44: #{tpu_custom_call.1} parent=5 // pred_fallthru
        _
    $region6: #{tpu_custom_call.1} parent=1 // loop_footer
      %s19 = sadd.s32 1, %s15
    $region7: #{tpu_custom_call.1} parent=1 // loop_footer_branch
      %14 = sbr.rel target = $region3
    $region8: #{tpu_custom_call.1} parent=1 // loop_exit
      _
    %488 = vsyncpa [#allocation3], 1
    %s489 = scalar_lea.sflag [#allocation3], 1
    %490 = vsyncpa %s489, 1
    %491 = vsyncpa [#allocation4], 1
    %s492 = scalar_lea.sflag [#allocation4], 1
    %493 = vsyncpa %s492, 1

</llo_original>
